<compile_context>
chip_gen: v5e
topology: v5e:2x2
jax: 0.10.0
libtpu: 0.0.40
codegen_flags: <defaults>
</compile_context>

<pallas_src>
import functools

import jax
import jax.numpy as jnp
from jax.experimental import pallas as pl
from jax.experimental.pallas import tpu as pltpu


def _dimreduce_kernel(x_ref, w_ref, shift_ref, o_ref, *, negative_slope):
    # x_ref:     (bN, C_in, T)   pixel tiles for bN images (lane axis = H*W tile)
    # w_ref:     (C_out, C_in)   1x1-conv weight with BN scale folded in
    # shift_ref: (C_out, 1)      folded BN shift = beta - mean * scale (f32)
    # o_ref:     (bN, C_out, T)
    bn = x_ref.shape[0]
    w = w_ref[...]
    shift = shift_ref[...]
    for b in range(bn):  # static unroll; bn is kept small (<=16) by the wrapper
        y = jnp.dot(w, x_ref[b], preferred_element_type=jnp.float32)
        y = y + shift
        if negative_slope == 0.0:
            y = jnp.maximum(y, 0.0)                        # nonlinear == 'relu'
        else:
            y = jnp.where(y > 0.0, y, negative_slope * y)  # nonlinear == 'leakyrelu'
        o_ref[b] = y.astype(o_ref.dtype)


def _choose_tiles(N, C_in, C_out, HW, x_itemsize, t_hw):
    """Pick (images-per-step bN, lane tile T, working-set bytes)."""
    # Conservative VMEM budget so the double-buffered pipeline fits v7x
    # (64 MiB physical) as well as v5e/v6e once vmem_limit_bytes is raised.
    budget = 24 << 20

    def working_set(bn, t):
        return (2 * bn * (C_in + C_out) * t * x_itemsize   # double-buffered x + out
                + C_in * C_out * 4 + C_out * 4)             # weight + shift (resident)

    # Lane tile: multiple of 128, or the full H*W extent if it is small.
    if HW <= t_hw:
        T = HW
    else:
        T = max(128, (t_hw // 128) * 128)
    # Shrink T until a single-image tile fits the VMEM budget.
    while T > 128 and working_set(1, T) > budget:
        T = max(128, ((T // 2 + 127) // 128) * 128)

    num_hw_tiles = pl.cdiv(HW, T)

    # If the whole problem would be one grid step, split the lane axis so both
    # v7x TensorCores get work (only when HW is big enough to split cleanly).
    if N == 1 and num_hw_tiles == 1 and HW >= 256:
        T = max(128, pl.cdiv(HW, 2 * 128) * 128)
        num_hw_tiles = pl.cdiv(HW, T)

    # Small-HW regime: batch images per grid step to amortize per-step overhead,
    # while keeping >=2 total steps when possible (megacore) and bN | N.
    bN = 1
    if N > 1:
        max_bn = N if num_hw_tiles >= 2 else max(1, N // 2)
        target_bytes = 2 << 20  # ~2 MiB of x per step
        want = max(1, min(max_bn, target_bytes // max(1, C_in * T * x_itemsize)))
        want = min(int(want), 16)  # cap static unroll depth in the kernel
        for cand in range(want, 0, -1):
            if N % cand == 0 and working_set(cand, T) <= budget:
                bN = cand
                break

    return bN, T, working_set(bN, T)


def dim_reduce_layer(x_nchw, conv_w, bn_gamma, bn_beta, bn_mean, bn_var,
                     eps=1e-5, nonlinear="relu", negative_slope=0.1, t_hw=2048):
    """Forward pass of DimReduceLayer (inference-mode BatchNorm).

    x_nchw: (N, C_in, H, W); conv_w: (C_out, C_in, 1, 1) (PyTorch OIHW layout).
    The output dtype matches the activation dtype of x.
    """
    N, C_in, H, W = x_nchw.shape
    C_out = conv_w.shape[0]
    HW = H * W

    x_dtype = x_nchw.dtype
    x_itemsize = x_nchw.dtype.itemsize
    # Match the weight dtype to low-precision activations (bf16/f16) so the MXU
    # runs bf16 x bf16 with f32 accumulation; keep f32 weights for f32 x.
    w_dtype = x_dtype if x_itemsize == 2 else jnp.float32

    # --- fold BN into the conv weight / a per-channel shift (wrapper-side, tiny) ---
    scale = bn_gamma.astype(jnp.float32) / jnp.sqrt(bn_var.astype(jnp.float32) + eps)
    w_folded = (conv_w.reshape(C_out, C_in).astype(jnp.float32)
                * scale[:, None]).astype(w_dtype)                        # (C_out, C_in)
    shift = (bn_beta.astype(jnp.float32)
             - bn_mean.astype(jnp.float32) * scale).reshape(C_out, 1)    # (C_out, 1) f32

    # Free (contiguous) reshape: keep NCHW, put H*W on the lane axis. No dtype cast.
    x_flat = x_nchw.reshape(N, C_in, HW)

    if nonlinear == "relu":
        neg_slope = 0.0
    elif nonlinear == "leakyrelu":
        neg_slope = float(negative_slope)
    else:
        raise ValueError(f"unsupported nonlinear: {nonlinear}")

    bN, T, ws = _choose_tiles(N, C_in, C_out, HW, x_itemsize, t_hw)
    grid = (N // bN, pl.cdiv(HW, T))

    kernel = functools.partial(_dimreduce_kernel, negative_slope=neg_slope)

    w_itemsize = jnp.dtype(w_dtype).itemsize
    cost = pl.CostEstimate(
        flops=2 * N * HW * C_in * C_out,
        transcendentals=0,
        bytes_accessed=(N * C_in * HW * x_itemsize        # read x
                        + C_out * C_in * w_itemsize       # read folded weight
                        + C_out * 4                       # read shift
                        + N * C_out * HW * x_itemsize),   # write out
    )

    # Explicit scoped-VMEM limit with headroom (covers v5e's 16 MiB default).
    vmem_limit = int(min(64 << 20, max(16 << 20, int(1.5 * ws) + (2 << 20))))

    out_flat = pl.pallas_call(
        kernel,
        out_shape=jax.ShapeDtypeStruct((N, C_out, HW), x_dtype),
        grid_spec=pltpu.PrefetchScalarGridSpec(
            num_scalar_prefetch=0,
            grid=grid,
            in_specs=[
                pl.BlockSpec((bN, C_in, T), lambda n, t: (n, 0, t)),
                pl.BlockSpec((C_out, C_in), lambda n, t: (0, 0)),
                pl.BlockSpec((C_out, 1), lambda n, t: (0, 0)),
            ],
            out_specs=pl.BlockSpec((bN, C_out, T), lambda n, t: (n, 0, t)),
        ),
        compiler_params=pltpu.CompilerParams(
            dimension_semantics=("parallel", "parallel"),
            vmem_limit_bytes=vmem_limit),
        cost_estimate=cost,
    )(x_flat, w_folded, shift)

    # Free reshape back to NCHW.
    return out_flat.reshape(N, C_out, H, W)


def _reference(x_nchw, conv_w, bn_gamma, bn_beta, bn_mean, bn_var,
               eps=1e-5, nonlinear="relu", negative_slope=0.1):
    # Pure-JAX f32 reference of the same forward pass (BN in inference mode).
    y = jax.lax.conv_general_dilated(
        x_nchw.astype(jnp.float32), conv_w.astype(jnp.float32),
        window_strides=(1, 1), padding="VALID",
        dimension_numbers=("NCHW", "OIHW", "NCHW"))
    scale = bn_gamma / jnp.sqrt(bn_var + eps)
    y = y * scale[None, :, None, None] + (bn_beta - bn_mean * scale)[None, :, None, None]
    if nonlinear == "relu":
        return jnp.maximum(y, 0.0)
    return jnp.where(y > 0.0, y, negative_slope * y)


def _make_inputs(key, N, C_in, H, W, C_out):
    kx, kw, kg, kb, km, kv = jax.random.split(key, 6)
    x = jax.random.normal(kx, (N, C_in, H, W), dtype=jnp.float32)
    conv_w = jax.random.normal(kw, (C_out, C_in, 1, 1), dtype=jnp.float32) * 0.1
    bn_gamma = 1.0 + 0.1 * jax.random.normal(kg, (C_out,), dtype=jnp.float32)
    bn_beta = 0.1 * jax.random.normal(kb, (C_out,), dtype=jnp.float32)
    bn_mean = 0.05 * jax.random.normal(km, (C_out,), dtype=jnp.float32)
    bn_var = jnp.abs(1.0 + 0.1 * jax.random.normal(kv, (C_out,), dtype=jnp.float32))
    return x, conv_w, bn_gamma, bn_beta, bn_mean, bn_var


if __name__ == "__main__":
    # TODO(synk): training-mode BatchNorm (batch statistics) is not implemented;
    # this matches the module's eval/inference forward (running stats).
    key = jax.random.PRNGKey(0)
    k1, k2 = jax.random.split(key)

    # Case 1: small shapes consistent with the module (N=2, C_in=32, H=W=16, C_out=16), ReLU.
    args1 = _make_inputs(k1, 2, 32, 16, 16, 16)
    out1 = jax.block_until_ready(dim_reduce_layer(*args1, nonlinear="relu"))
    ref1 = _reference(*args1, nonlinear="relu")
    assert out1.shape == (2, 16, 16, 16)
    assert jnp.allclose(out1, ref1, atol=1e-4, rtol=1e-4), "mismatch vs reference (case 1)"

    # Case 2: non-(8,128)-aligned channel / spatial extents, LeakyReLU branch.
    args2 = _make_inputs(k2, 1, 48, 12, 12, 24)
    out2 = jax.block_until_ready(dim_reduce_layer(*args2, nonlinear="leakyrelu"))
    ref2 = _reference(*args2, nonlinear="leakyrelu")
    assert out2.shape == (1, 24, 12, 12)
    assert jnp.allclose(out2, ref2, atol=1e-4, rtol=1e-4), "mismatch vs reference (case 2)"

    # Case 3: bf16 activations (halved HBM traffic path), loose tolerance vs f32 ref.
    x_bf16 = args1[0].astype(jnp.bfloat16)
    out3 = jax.block_until_ready(
        dim_reduce_layer(x_bf16, *args1[1:], nonlinear="relu"))
    assert out3.dtype == jnp.bfloat16 and out3.shape == (2, 16, 16, 16)
    assert jnp.allclose(out3.astype(jnp.float32), ref1, atol=5e-2, rtol=5e-2), \
        "mismatch vs reference (case 3, bf16)"

    print("KERNEL_OK")
</pallas_src>

<mosaic_0001>
module attributes {stable_mosaic.version = 11 : i64} {
  func.func @_dimreduce_kernel(%arg0: i32, %arg1: i32, %arg2: memref<1x32x256xf32, #tpu.memory_space<vmem>>, %arg3: memref<16x32xf32, #tpu.memory_space<vmem>>, %arg4: memref<16x1xf32, #tpu.memory_space<vmem>>, %arg5: memref<1x16x256xf32, #tpu.memory_space<vmem>>) attributes {dimension_semantics = [#tpu.dimension_semantics<parallel>, #tpu.dimension_semantics<parallel>], iteration_bounds = array<i64: 2, 1>, scalar_prefetch = 0 : i64, scratch_operands = 0 : i64, tpu.core_type = #tpu.core_type<tc>, window_params = [{transform_indices = @transform_0, window_bounds = array<i64: 1, 32, 256>}, {pipeline_mode = #tpu.pipeline_mode<synchronous>, transform_indices = @transform_1, window_bounds = array<i64: 16, 32>}, {pipeline_mode = #tpu.pipeline_mode<synchronous>, transform_indices = @transform_2, window_bounds = array<i64: 16, 1>}, {transform_indices = @transform_3, window_bounds = array<i64: 1, 16, 256>}]} {
    %c0 = arith.constant 0 : index
    %c0_0 = arith.constant 0 : index
    %0 = vector.load %arg3[%c0, %c0_0] : memref<16x32xf32, #tpu.memory_space<vmem>>, vector<16x32xf32>
    %c0_1 = arith.constant 0 : index
    %c0_2 = arith.constant 0 : index
    %1 = vector.load %arg4[%c0_1, %c0_2] : memref<16x1xf32, #tpu.memory_space<vmem>>, vector<16x1xf32>
    %c0_3 = arith.constant 0 : index
    %c0_4 = arith.constant 0 : index
    %c0_5 = arith.constant 0 : index
    %2 = vector.load %arg2[%c0_3, %c0_4, %c0_5] : memref<1x32x256xf32, #tpu.memory_space<vmem>>, vector<1x32x256xf32>
    %3 = vector.shape_cast %2 : vector<1x32x256xf32> to vector<32x256xf32>
    %cst = arith.constant dense<0.000000e+00> : vector<16x256xf32>
    %4 = tpu.matmul %0, %3, %cst {dimension_numbers = #tpu.dot_dimension_numbers<[1], [0], [0], [1], [0, 0, 1, 1], [], []>} : vector<16x32xf32>, vector<32x256xf32>, vector<16x256xf32> -> vector<16x256xf32>
    %5 = vector.broadcast %1 : vector<16x1xf32> to vector<16x256xf32>
    %6 = arith.addf %4, %5 : vector<16x256xf32>
    %cst_6 = arith.constant 0.000000e+00 : f32
    %7 = vector.broadcast %cst_6 : f32 to vector<16x256xf32>
    %8 = arith.maximumf %6, %7 : vector<16x256xf32>
    %c0_7 = arith.constant 0 : index
    %c0_8 = arith.constant 0 : index
    %c0_9 = arith.constant 0 : index
    %9 = vector.load %arg5[%c0_7, %c0_8, %c0_9] : memref<1x16x256xf32, #tpu.memory_space<vmem>>, vector<1x16x256xf32>
    %10 = vector.shape_cast %9 : vector<1x16x256xf32> to vector<16x256xf32>
    %11 = vector.shape_cast %8 : vector<16x256xf32> to vector<1x16x256xf32>
    tpu.vector_store %arg5[%c0_7, %c0_8, %c0_9], %11 {strides = array<i32>} : memref<1x16x256xf32, #tpu.memory_space<vmem>>, vector<1x16x256xf32>,
    return
  }
  func.func @transform_0(%arg0: i32, %arg1: i32) -> (i32, i32, i32) {
    %c0_i32 = arith.constant 0 : i32
    %c0_i32_0 = arith.constant 0 : i32
    return %arg0, %c0_i32, %arg1 : i32, i32, i32
  }
  func.func @transform_1(%arg0: i32, %arg1: i32) -> (i32, i32) {
    %c0_i32 = arith.constant 0 : i32
    %c0_i32_0 = arith.constant 0 : i32
    %c0_i32_1 = arith.constant 0 : i32
    return %c0_i32, %c0_i32_0 : i32, i32
  }
  func.func @transform_2(%arg0: i32, %arg1: i32) -> (i32, i32) {
    %c0_i32 = arith.constant 0 : i32
    %c0_i32_0 = arith.constant 0 : i32
    %c0_i32_1 = arith.constant 0 : i32
    return %c0_i32, %c0_i32_0 : i32, i32
  }
  func.func @transform_3(%arg0: i32, %arg1: i32) -> (i32, i32, i32) {
    %c0_i32 = arith.constant 0 : i32
    %c0_i32_0 = arith.constant 0 : i32
    return %arg0, %c0_i32, %arg1 : i32, i32, i32
  }
}

</mosaic_0001>

<llo_original>
// kernel: tpu_custom_call.1
$region0: #{tpu_custom_call.1}
  #allocation0 [shape = 'u32[]', space=smem, size = 0x4, offset = 0x4, fixed_abs, tag = 'smem constant byte address 0x4 - core index']
  #allocation1 [shape = 'u32[72,128]{1,0:T(1,128)}', space=vmem, size = 0x9000, scoped, tag = 'internal scratch']
  %s0 = inlined_call_operand.hbm [shape: f32[2,32,256], index: 0, kind: input, shape index: {}]
  %s1 = inlined_call_operand.vmem [shape: f32[16,32], index: 1, kind: input, shape index: {}]
  %s2 = inlined_call_operand.vmem [shape: f32[16,1], index: 2, kind: input, shape index: {}]
  %s3 = inlined_call_operand.hbm [shape: f32[2,16,256], index: 3, kind: output, shape index: {}]
  %s4 = sld [smem:[#allocation0]]
  $region49: #{tpu_custom_call.1} parent=0
    _
  %s6 = ssub.s32 1, %s4
  %s7 = scalar_select 0, %s6, %s4
  $region1: #{tpu_custom_call.1} parent=0
    #allocation2 [shape = 'u8[65536]{0}', space=vmem, size = 0x10000, scoped, tag = 'input window, operand 0']
    #allocation3 [shape = 's32[2]{0}', space=sflag, size = 0x8, scoped, tag = 'scoped memory for tpu_custom_call.1']
    #allocation4 [shape = 's32[2]{0}', space=sflag, size = 0x8, scoped, tag = 'scoped memory for tpu_custom_call.1']
    #allocation5 [shape = 'u8[32768]{0}', space=vmem, size = 0x8000, scoped, tag = 'output window, operand 0']
    %8 = vsyncpa [#allocation3], 0
    %s9 = scalar_lea.sflag [#allocation3], 1
    %10 = vsyncpa %s9, 0
    %11 = vsyncpa [#allocation4], 0
    %s12 = scalar_lea.sflag [#allocation4], 1
    %13 = vsyncpa %s12, 0
    loop: start=0, step=1, limit=4
    $region2: #{tpu_custom_call.1} parent=1 // loop_pre_header
      _
    $region3: #{tpu_custom_call.1} parent=1 // loop_header
      %s15 = sphi 0, %s19
      %p16 = scmp.ge.s32.totalorder %s15, 4
      %s22 = sphi 0, %s34
      %s23 = sphi 0, %s30
      %s24 = sphi 0, %s22
      %s25 = sphi 0, %s23
      %s26 = sphi 0, %s24
      %s27 = sphi 0, %s25
      %s39 = sphi 0, %s41
      %s42 = sphi 0, %s39
      %s43 = sphi 0, %s42
      %s59 = sphi 0, %s43
      %s63 = sphi 0, %s63
      %s65 = sphi 0, %s63
      %s66 = sphi 0, %s65
      %s80 = sphi 0, %s66
      %s84 = sphi 0, %s84
      %s86 = sphi 0, %s84
      %s87 = sphi 0, %s86
      %s101 = sphi 0, %s87
      %s109 = sphi 0, %s111
      %s112 = sphi 0, %s109
      %s113 = sphi 0, %s112
      %s129 = sphi 0, %s113
    $region4: #{tpu_custom_call.1} parent=1 // loop_header_branch
      %18 = sbr.rel (%p16) target = $region8
    $region5: #{tpu_custom_call.1} parent=1 // loop_body
      %s20 = ssub.s32 %s15, 1
      %s21 = ssub.s32 %s15, 2
      %s28 = sadd.s32 1, %s23
      %p29 = scmp.ge.s32.totalorder %s28, 1
      %s30 = scalar_select %p29, 0, %s28
      %s31 = sadd.s32 1, %s22
      %s32 = scalar_select %p29, %s31, %s22
      %p33 = scmp.ge.s32.totalorder %s32, 2
      %s34 = scalar_select %p33, 0, %s32
      %s35 = ssub.s32 %s22, %s34
      %s36 = ssub.s32 %s23, %s30
      %s37 = sor.u32 %s35, %s36
      %p38 = scmp.eq.s32.totalorder %s37, 0
      %s40 = sadd.s32 %s39, 1
      %s41 = scalar_select %p38, %s39, %s40
      %p44 = pneg %p38
      %p45 = scmp.eq.s32.totalorder %s15, 1
      %p46 = por %p44, %p45
      %p47 = scmp.ne.s32.totalorder %s39, %s42
      %p48 = scmp.eq.s32.totalorder %s15, 0
      %p49 = por %p47, %p48
      %p50 = scmp.ne.s32.totalorder %s39, %s42
      %p51 = scmp.eq.s32.totalorder %s20, 1
      %p52 = por %p50, %p51
      %p53 = scmp.ne.s32.totalorder %s42, %s43
      %p54 = scmp.eq.s32.totalorder %s20, 0
      %p55 = por %p53, %p54
      %p56 = scmp.ne.s32.totalorder %s42, %s43
      %p57 = scmp.eq.s32.totalorder %s21, 1
      %p58 = por %p56, %p57
      %p60 = scmp.ne.s32.totalorder %s43, %s59
      %p61 = scmp.eq.s32.totalorder %s21, 0
      %p62 = por %p60, %p61
      %s64 = sadd.s32 %s63, 1
      %p67 = scmp.eq.s32.totalorder %s15, 1
      %p68 = scmp.ne.s32.totalorder %s63, %s65
      %p69 = scmp.eq.s32.totalorder %s15, 0
      %p70 = por %p68, %p69
      %p71 = scmp.ne.s32.totalorder %s63, %s65
      %p72 = scmp.eq.s32.totalorder %s20, 1
      %p73 = por %p71, %p72
      %p74 = scmp.ne.s32.totalorder %s65, %s66
      %p75 = scmp.eq.s32.totalorder %s20, 0
      %p76 = por %p74, %p75
      %p77 = scmp.ne.s32.totalorder %s65, %s66
      %p78 = scmp.eq.s32.totalorder %s21, 1
      %p79 = por %p77, %p78
      %p81 = scmp.ne.s32.totalorder %s66, %s80
      %p82 = scmp.eq.s32.totalorder %s21, 0
      %p83 = por %p81, %p82
      %s85 = sadd.s32 %s84, 1
      %p88 = scmp.eq.s32.totalorder %s15, 1
      %p89 = scmp.ne.s32.totalorder %s84, %s86
      %p90 = scmp.eq.s32.totalorder %s15, 0
      %p91 = por %p89, %p90
      %p92 = scmp.ne.s32.totalorder %s84, %s86
      %p93 = scmp.eq.s32.totalorder %s20, 1
      %p94 = por %p92, %p93
      %p95 = scmp.ne.s32.totalorder %s86, %s87
      %p96 = scmp.eq.s32.totalorder %s20, 0
      %p97 = por %p95, %p96
      %p98 = scmp.ne.s32.totalorder %s86, %s87
      %p99 = scmp.eq.s32.totalorder %s21, 1
      %p100 = por %p98, %p99
      %p102 = scmp.ne.s32.totalorder %s87, %s101
      %p103 = scmp.eq.s32.totalorder %s21, 0
      %p104 = por %p102, %p103
      %s105 = ssub.s32 %s22, %s34
      %s106 = ssub.s32 %s23, %s30
      %s107 = sor.u32 %s105, %s106
      %p108 = scmp.eq.s32.totalorder %s107, 0
      %s110 = sadd.s32 %s109, 1
      %s111 = scalar_select %p108, %s109, %s110
      %p114 = pneg %p108
      %p115 = scmp.eq.s32.totalorder %s15, 1
      %p116 = por %p114, %p115
      %p117 = scmp.ne.s32.totalorder %s109, %s112
      %p118 = scmp.eq.s32.totalorder %s15, 0
      %p119 = por %p117, %p118
      %p120 = scmp.ne.s32.totalorder %s109, %s112
      %p121 = scmp.eq.s32.totalorder %s20, 1
      %p122 = por %p120, %p121
      %p123 = scmp.ne.s32.totalorder %s112, %s113
      %p124 = scmp.eq.s32.totalorder %s20, 0
      %p125 = por %p123, %p124
      %p126 = scmp.ne.s32.totalorder %s112, %s113
      %p127 = scmp.eq.s32.totalorder %s21, 1
      %p128 = por %p126, %p127
      %p130 = scmp.ne.s32.totalorder %s113, %s129
      %p131 = scmp.eq.s32.totalorder %s21, 0
      %p132 = por %p130, %p131
      %p133 = scmp.le.s32.totalorder 1, %s15
      %p134 = scmp.lt.s32.totalorder %s15, 3
      %p135 = pnand %p133, %p134
      %p136 = pneg %p135
      // Predicated region
      $region9: #{tpu_custom_call.1} parent=5 // pred_check
        _
      $region10: #{tpu_custom_call.1} parent=5 // pred_check_branch
        %138 = sbr.rel (%p135) target = $region12
      $region11: #{tpu_custom_call.1} parent=5 // pred_region
        %s139 = ssub.s32 %s15, 1
        // Predicated region
        $region13: #{tpu_custom_call.1} parent=11 // pred_check
          %p140 = pneg %p76
        $region14: #{tpu_custom_call.1} parent=11 // pred_check_branch
          %142 = sbr.rel (%p140) target = $region16
        $region15: #{tpu_custom_call.1} parent=11 // pred_region
          _
        $region16: #{tpu_custom_call.1} parent=11 // pred_fallthru
          _
        // Predicated region
        $region17: #{tpu_custom_call.1} parent=11 // pred_check
          %p143 = pneg %p97
        $region18: #{tpu_custom_call.1} parent=11 // pred_check_branch
          %145 = sbr.rel (%p143) target = $region20
        $region19: #{tpu_custom_call.1} parent=11 // pred_region
          _
        $region20: #{tpu_custom_call.1} parent=11 // pred_fallthru
          _
      $region12: #{tpu_custom_call.1} parent=5 // pred_fallthru
        _
      %p146 = scmp.lt.s32.totalorder %s15, 2
      // Predicated region
      $region21: #{tpu_custom_call.1} parent=5 // pred_check
        %p147 = pneg %p146
      $region22: #{tpu_custom_call.1} parent=5 // pred_check_branch
        %149 = sbr.rel (%p147) target = $region24
      $region23: #{tpu_custom_call.1} parent=5 // pred_region
        // Predicated region
        $region25: #{tpu_custom_call.1} parent=23 // pred_check
          %p150 = pneg %p49
        $region26: #{tpu_custom_call.1} parent=23 // pred_check_branch
          %152 = sbr.rel (%p150) target = $region28
        $region27: #{tpu_custom_call.1} parent=23 // pred_region
          %s153 = sand.u32 %s39, 1
          %s154 = scalar_lea.sflag [#allocation3], %s153
          %s155 = sand.u32 %s39, 1
          %s156 = smul.addr %s155, 64
          %s157 = scalar_lea.vmem [#allocation2], %s156
          %s158 = smul.u32 2, %s23
          %160 = vsyncadd %s154, 0
          %s161 = smul.addr %s22, 8
          %s162 = sadd.s32 %s158, %s161
          %s163 = smul.addr %s162, 8
          %s164 = scalar_lea.hbm %s0, %s163
          %s165 = sshll.u32 %s164, 4
          %s166 = int_to_ptr.hbm [resolvable:$true] %s165
          %s167 = sshll.u32 %s157, 4
          %s168 = int_to_ptr.vmem [resolvable:$true] %s167
          %173 = dma.hbm_to_vmem [thread:$0]  %s166, 1024, %s168, %s154, 256, 256, 16
        $region28: #{tpu_custom_call.1} parent=23 // pred_fallthru
          _
      $region24: #{tpu_custom_call.1} parent=5 // pred_fallthru
        _
      %p174 = scmp.le.s32.totalorder 1, %s15
      %p175 = scmp.lt.s32.totalorder %s15, 3
      %p176 = pnand %p174, %p175
      %p177 = pneg %p176
      // Predicated region
      $region29: #{tpu_custom_call.1} parent=5 // pred_check
        _
      $region30: #{tpu_custom_call.1} parent=5 // pred_check_branch
        %179 = sbr.rel (%p176) target = $region32
      $region31: #{tpu_custom_call.1} parent=5 // pred_region
        %s180 = ssub.s32 %s15, 1
        %s181 = sand.u32 %s42, 1
        %s182 = scalar_lea.sflag [#allocation3], %s181
        %s183 = sand.u32 %s42, 1
        %s184 = smul.addr %s183, 64
        %s185 = scalar_lea.vmem [#allocation2], %s184
        // Predicated region
        $region33: #{tpu_custom_call.1} parent=31 // pred_check
          %p186 = pneg %p55
        $region34: #{tpu_custom_call.1} parent=31 // pred_check_branch
          %188 = sbr.rel (%p186) target = $region36
        $region35: #{tpu_custom_call.1} parent=31 // pred_region
          %190 = dma.done %s182, 1024
        $region36: #{tpu_custom_call.1} parent=31 // pred_fallthru
          _
        %s191 = sand.u32 %s42, 1
        %s192 = scalar_lea.sflag [#allocation3], %s191
        %s193 = sand.u32 %s42, 1
        %s194 = smul.addr %s193, 64
        %s195 = scalar_lea.vmem [#allocation2], %s194
        %p196 = pneg %p55
        %p197 = pneg %p52
        %p198 = pneg %p76
        %p199 = pneg %p73
        %p200 = pneg %p97
        %p201 = pneg %p94
        %p202 = pneg %p125
        %p203 = pneg %p122
        %s204 = sand.u32 %s112, 1
        %s205 = scalar_lea.sflag [#allocation4], %s204
        %s206 = sand.u32 %s112, 1
        %s207 = smul.addr %s206, 32
        %s208 = scalar_lea.vmem [#allocation5], %s207
        %s209 = smul.u32 2, %s25
        %s210 = smul.u32 2, %s25
        %v211 = vld [vmem:[%s1] sm:$0xff]
        %v212 = vld [vmem:[%s1 + $0x8] sm:$0xff]
        %v213 = vld [vmem:[%s2] sm:$0xff]
        %v214 = vld [vmem:[%s2 + $0x8] sm:$0xff]
        %v215 = vld [vmem:[%s185] sm:$0xff]
        %v216 = vld [vmem:[%s185 + $0x8] sm:$0xff]
        %v217 = vld [vmem:[%s185 + $0x10] sm:$0xff]
        %v218 = vld [vmem:[%s185 + $0x18] sm:$0xff]
        %v219 = vld [vmem:[%s185 + $0x20] sm:$0xff]
        %v220 = vld [vmem:[%s185 + $0x28] sm:$0xff]
        %v221 = vld [vmem:[%s185 + $0x30] sm:$0xff]
        %v222 = vld [vmem:[%s185 + $0x38] sm:$0xff]
        %224 = vset.pattern.permute.xlu0 0
        %225 = vperm.xlu0 %224, %v213
        %v226 = vpop.permute.xlu0 %225
        %229 = vset.pattern.permute.xlu0 0
        %230 = vperm.xlu0 %229, %v214
        %v231 = vpop.permute.xlu0 %230
        %vm233 = vcmask 261120
        %v235 = vsel %vm233, %v211, 0
        %v238 = vsel %vm233, %v212, 0
        %240 = vmatpush.msra.mxu0 0.0
        %241 = vmatpush.msra.mxu0 0.0
        %242 = vmatpush.msra.mxu0 0.0
        %243 = vmatpush.msra.mxu0 0.0
        %244 = vmatpush.msra.mxu0 0.0
        %245 = vmatpush.msra.mxu0 0.0
        %246 = vmatpush.msra.mxu0 0.0
        %247 = vmatpush.msra.mxu0 0.0
        %248 = vmatpush.msra.mxu0 0.0
        %249 = vmatpush.msra.mxu0 0.0
        %250 = vmatpush.msra.mxu0 0.0
        %251 = vmatpush.msra.mxu0 0.0
        %252 = vmatpush.msra.mxu0 %v221
        %253 = vmatpush.msra.mxu0 %v219
        %254 = vmatpush.msra.mxu0 %v217
        %255 = vmatpush.msra.mxu0 %v215
        %256 = vmatmul.f32.gmra.mxu0 %v235
        %v257 = vpop.f32.mrf.mxu0
        %v258 = vadd.f32 %v226, %v257
        %259 = vmatmul.f32.gmra.mxu0 %v238
        %v260 = vpop.f32.mrf.mxu0
        %v261 = vadd.f32 %v231, %v260
        %262 = vdwg.mxu0
        %263 = vmatpush.msra.mxu0 0.0
        %264 = vmatpush.msra.mxu0 0.0
        %265 = vmatpush.msra.mxu0 0.0
        %266 = vmatpush.msra.mxu0 0.0
        %267 = vmatpush.msra.mxu0 0.0
        %268 = vmatpush.msra.mxu0 0.0
        %269 = vmatpush.msra.mxu0 0.0
        %270 = vmatpush.msra.mxu0 0.0
        %271 = vmatpush.msra.mxu0 0.0
        %272 = vmatpush.msra.mxu0 0.0
        %273 = vmatpush.msra.mxu0 0.0
        %274 = vmatpush.msra.mxu0 0.0
        %275 = vmatpush.msra.mxu0 %v222
        %276 = vmatpush.msra.mxu0 %v220
        %277 = vmatpush.msra.mxu0 %v218
        %278 = vmatpush.msra.mxu0 %v216
        %279 = vmatmul.f32.gmra.mxu0 %v235
        %v280 = vpop.f32.mrf.mxu0
        %v281 = vadd.f32 %v226, %v280
        %282 = vmatmul.f32.gmra.mxu0 %v238
        %v283 = vpop.f32.mrf.mxu0
        %v284 = vadd.f32 %v231, %v283
        %285 = vdwg.mxu0
        %v286 = vmax.f32 %v258, 0.0
        %v287 = vmax.f32 %v281, 0.0
        %v288 = vmax.f32 %v261, 0.0
        %v289 = vmax.f32 %v284, 0.0
        %290 = vst [vmem:[%s208] sm:$0xff] %v286
        %291 = vst [vmem:[%s208 + $0x8] sm:$0xff] %v287
        %292 = vst [vmem:[%s208 + $0x10] sm:$0xff] %v288
        %293 = vst [vmem:[%s208 + $0x18] sm:$0xff] %v289
        %s294 = sand.u32 %s112, 1
        %s295 = scalar_lea.sflag [#allocation4], %s294
        %s296 = sand.u32 %s112, 1
        %s297 = smul.addr %s296, 32
        %s298 = scalar_lea.vmem [#allocation5], %s297
        // Predicated region
        $region37: #{tpu_custom_call.1} parent=31 // pred_check
          %p299 = pneg %p122
        $region38: #{tpu_custom_call.1} parent=31 // pred_check_branch
          %301 = sbr.rel (%p299) target = $region40
        $region39: #{tpu_custom_call.1} parent=31 // pred_region
          %s302 = smul.u32 2, %s25
          %304 = vsyncadd %s295, 0
          %s305 = smul.addr %s24, 4
          %s306 = sadd.s32 %s302, %s305
          %s307 = smul.addr %s306, 8
          %s308 = scalar_lea.hbm %s3, %s307
          %s309 = sshll.u32 %s298, 4
          %s310 = int_to_ptr.vmem [resolvable:$true] %s309
          %s311 = sshll.u32 %s308, 4
          %s312 = int_to_ptr.hbm [resolvable:$true] %s311
          %317 = dma.vmem_to_hbm [thread:$0]  %s310, 512, %s312, %s295, 256, 256, 16
        $region40: #{tpu_custom_call.1} parent=31 // pred_fallthru
          _
      $region32: #{tpu_custom_call.1} parent=5 // pred_fallthru
        _
      %p318 = scmp.le.s32.totalorder 2, %s15
      // Predicated region
      $region41: #{tpu_custom_call.1} parent=5 // pred_check
        %p319 = pneg %p318
      $region42: #{tpu_custom_call.1} parent=5 // pred_check_branch
        %321 = sbr.rel (%p319) target = $region44
      $region43: #{tpu_custom_call.1} parent=5 // pred_region
        %s322 = ssub.s32 %s15, 2
        // Predicated region
        $region45: #{tpu_custom_call.1} parent=43 // pred_check
          %p323 = pneg %p128
        $region46: #{tpu_custom_call.1} parent=43 // pred_check_branch
          %325 = sbr.rel (%p323) target = $region48
        $region47: #{tpu_custom_call.1} parent=43 // pred_region
          %s326 = sand.u32 %s113, 1
          %s327 = scalar_lea.sflag [#allocation4], %s326
          %s328 = sand.u32 %s113, 1
          %s329 = smul.addr %s328, 32
          %s330 = scalar_lea.vmem [#allocation5], %s329
          %332 = dma.done %s327, 512
        $region48: #{tpu_custom_call.1} parent=43 // pred_fallthru
          _
      $region44: #{tpu_custom_call.1} parent=5 // pred_fallthru
        _
    $region6: #{tpu_custom_call.1} parent=1 // loop_footer
      %s19 = sadd.s32 1, %s15
    $region7: #{tpu_custom_call.1} parent=1 // loop_footer_branch
      %14 = sbr.rel target = $region3
    $region8: #{tpu_custom_call.1} parent=1 // loop_exit
      _
    %333 = vsyncpa [#allocation3], 1
    %s334 = scalar_lea.sflag [#allocation3], 1
    %335 = vsyncpa %s334, 1
    %336 = vsyncpa [#allocation4], 1
    %s337 = scalar_lea.sflag [#allocation4], 1
    %338 = vsyncpa %s337, 1

</llo_original>
